<compile_context>
chip_gen: v5e
topology: v5e:2x2
jax: 0.10.0
libtpu: 0.0.40
codegen_flags: <defaults>
</compile_context>

<pallas_src>
import functools

import jax
import jax.numpy as jnp
from jax import lax
from jax.experimental import pallas as pl
from jax.experimental.pallas import tpu as pltpu


def _cosine_proto_kernel(support_ref, query_ref, out_ref, *, temperature, eps, p_pad):
    # support_ref: (Bb, S, P, D) bf16, query_ref: (Bb, NQ, D) bf16, out_ref: (Bb, NQ, P_pad) f32
    sup = support_ref[...]                       # keep bf16 (MXU operand dtype)
    q = query_ref[...]                           # keep bf16
    Bb, S, P, D = sup.shape

    # Prototype = SUM over shots (the mean's 1/S cancels under cosine normalization; the eps
    # clamp then applies to ||sum|| = S*||mean||, numerically irrelevant for eps=1e-8).
    # Accumulate in f32 for accuracy, round back to bf16 only for the MXU operand.
    proto_f32 = jnp.sum(sup.astype(jnp.float32), axis=1)            # (Bb, P, D)
    if p_pad > P:
        # Zero-pad the prototype axis so the matmul output / store are lane-dense.
        # Padded rows: raw == 0 -> logits == 0 (never NaN, inv_p is eps-clamped); sliced off
        # in the wrapper.
        proto_f32 = jnp.concatenate(
            [proto_f32, jnp.zeros((Bb, p_pad - P, D), jnp.float32)], axis=1)

    # Inverse norms via rsqrt (EUP slot):
    #   rsqrt(max(||x||^2, eps^2)) == 1 / max(||x||, eps)   (matches F.cosine_similarity clamp)
    eps2 = eps * eps
    qf = q.astype(jnp.float32)
    q_nsq = jnp.sum(qf * qf, axis=-1, keepdims=True)                 # (Bb, NQ, 1)
    p_nsq = jnp.sum(proto_f32 * proto_f32, axis=-1)                  # (Bb, P_pad) - no keepdims
    inv_q = lax.rsqrt(jnp.maximum(q_nsq, eps2)) * temperature        # temperature folded in
    inv_p = lax.rsqrt(jnp.maximum(p_nsq, eps2))                      # (Bb, P_pad)

    # bf16 x bf16 MXU matmul on unnormalized vectors, f32 accumulation, post-scaled on the
    # small (NQ, P_pad) tile. inv_p broadcasts with P already on the lane axis (no transpose).
    raw = jnp.einsum('bqd,bpd->bqp', q, proto_f32.astype(q.dtype),
                     preferred_element_type=jnp.float32)             # (Bb, NQ, P_pad)
    logits = raw * inv_q * inv_p[:, None, :]
    out_ref[...] = logits.astype(out_ref.dtype)


def _tensorcores_per_chip():
    """Heuristic TensorCore count per chip (perf-only decision, never correctness)."""
    try:
        kind = jax.devices()[0].device_kind.lower()
    except Exception:
        return 1
    if "lite" in kind or "v5e" in kind or "v6e" in kind or "v6 lite" in kind:
        return 1
    if "v4" in kind or "v5p" in kind or "v7" in kind:
        return 2
    return 1


def _pick_block_b(B, per_episode_bytes, num_cores, max_bb=128, vmem_budget_bytes=12 << 20):
    """Episodes per grid step.

    Maximize the block (amortizes the ~600-cycle per-step overhead, makes HBM DMAs larger)
    subject to a conservative VMEM budget; only on multi-TensorCore chips keep >= num_cores
    grid steps so each core gets work. Bb is always a divisor of B so the wrapper never has
    to materialize padded copies of support/query.
    """
    cap = max(1, min(max_bb, vmem_budget_bytes // max(1, per_episode_bytes)))
    if num_cores >= 2 and B >= 2:
        cap = min(cap, pl.cdiv(B, num_cores))
    cap = max(1, min(cap, B))
    for bb in range(cap, 0, -1):
        if B % bb == 0:
            return bb
    return 1


def mynet_meta_forward(support, query, temperature=16.0, eps=1e-8):
    """MYNET_Meta._forward: cosine-similarity logits between query embeddings and prototypes.

    support: (B, S, P, D), query: (B, Q1, Q2, D). Returns (B*NQ, P) float32, NQ = Q1*Q2.
    """
    B, S, P, D = support.shape
    assert query.shape[0] == B and query.shape[-1] == D
    NQ = query.shape[1] * query.shape[2]

    # Glue: PyTorch's `.view(-1, emb_dim)` flatten (per-episode kept separate for the kernel).
    query_flat = query.reshape(B, NQ, D)

    # Memory-bound kernel: feed the MXU bf16 operands. In the full pipeline the encoder should
    # emit bf16 embeddings directly so this cast is a no-op.
    if support.dtype != jnp.bfloat16:
        support = support.astype(jnp.bfloat16)
    if query_flat.dtype != jnp.bfloat16:
        query_flat = query_flat.astype(jnp.bfloat16)
    in_itemsize = 2

    # Lane-dense output: pad the prototype axis up to a multiple of 128 (sliced off below).
    P_pad = pl.cdiv(P, 128) * 128

    # VMEM accounting: double-buffered bf16 input blocks + double-buffered f32 output block +
    # in-kernel f32 temporaries (upcast support for the shot sum, padded proto, upcast q, raw
    # and scaled logits tiles).
    per_episode_bytes = (
        2 * (S * P * D + NQ * D) * in_itemsize
        + 2 * NQ * P_pad * 4
        + (S * P * D + P_pad * D + NQ * D + 2 * NQ * P_pad) * 4
    )
    num_cores = _tensorcores_per_chip()
    Bb = _pick_block_b(B, per_episode_bytes, num_cores)

    kernel = functools.partial(
        _cosine_proto_kernel,
        temperature=float(temperature), eps=float(eps), p_pad=P_pad,
    )

    cost = pl.CostEstimate(
        flops=2 * B * NQ * P_pad * D      # matmul
        + B * S * P * D                   # shot sum
        + 2 * B * (NQ + P) * D            # norm reductions
        + 2 * B * NQ * P_pad,             # epilogue scaling
        transcendentals=B * (NQ + P_pad),
        bytes_accessed=(support.size + query_flat.size) * in_itemsize + B * NQ * P_pad * 4,
    )

    out = pl.pallas_call(
        kernel,
        out_shape=jax.ShapeDtypeStruct((B, NQ, P_pad), jnp.float32),
        grid_spec=pltpu.PrefetchScalarGridSpec(
            num_scalar_prefetch=0,
            grid=(B // Bb,),
            in_specs=[
                pl.BlockSpec((Bb, S, P, D), lambda b: (b, 0, 0, 0)),
                pl.BlockSpec((Bb, NQ, D), lambda b: (b, 0, 0)),
            ],
            out_specs=pl.BlockSpec((Bb, NQ, P_pad), lambda b: (b, 0, 0)),
        ),
        compiler_params=pltpu.CompilerParams(
            dimension_semantics=("parallel",),
            vmem_limit_bytes=32 << 20,     # safe on v5e/v6e (128 MiB) and v7x (64 MiB physical)
        ),
        cost_estimate=cost,
    )(support, query_flat)

    if P_pad != P:
        out = out[..., :P]
    # PyTorch returns (num_batch * num_query, num_proto)
    return out.reshape(B * NQ, P)


def _reference(support, query, temperature=16.0, eps=1e-8):
    """Pure-JAX reference mirroring the PyTorch code path (f32 math on the given inputs)."""
    B, S, P, D = support.shape
    NQ = query.shape[1] * query.shape[2]
    sup = support.astype(jnp.float32)
    q = query.astype(jnp.float32).reshape(B, NQ, D)
    proto = sup.mean(axis=1)                                            # (B, P, D)
    qn = q / jnp.maximum(jnp.linalg.norm(q, axis=-1, keepdims=True), eps)
    pn = proto / jnp.maximum(jnp.linalg.norm(proto, axis=-1, keepdims=True), eps)
    logits = jnp.einsum('bqd,bpd->bqp', qn, pn) * temperature           # (B, NQ, P)
    return logits.reshape(B * NQ, P)


if __name__ == "__main__":
    key = jax.random.PRNGKey(0)
    k1, k2 = jax.random.split(key)

    # Small, module-consistent shapes: 2 episodes, 4-shot, 8-way, 3x8 queries, emb_dim=128.
    B, S, P, Q1, Q2, D = 2, 4, 8, 3, 8, 128
    temperature = 16.0

    # Embeddings arrive in bf16 (encoder output dtype in the optimized pipeline).
    support = jax.random.normal(k1, (B, S, P, D), dtype=jnp.float32).astype(jnp.bfloat16)
    query = jax.random.normal(k2, (B, Q1, Q2, D), dtype=jnp.float32).astype(jnp.bfloat16)

    logits = mynet_meta_forward(support, query, temperature=temperature)
    logits = jax.block_until_ready(logits)

    ref = _reference(support, query, temperature=temperature)
    assert logits.shape == (B * Q1 * Q2, P), logits.shape
    max_err = float(jnp.max(jnp.abs(logits - ref)))
    assert max_err < 2e-2, max_err

    print("KERNEL_OK")
</pallas_src>

<mosaic_0001>
module attributes {stable_mosaic.version = 11 : i64} {
  func.func @_cosine_proto_kernel(%arg0: i32, %arg1: memref<2x4x8x128xbf16, #tpu.memory_space<vmem>>, %arg2: memref<2x24x128xbf16, #tpu.memory_space<vmem>>, %arg3: memref<2x24x128xf32, #tpu.memory_space<vmem>>) attributes {dimension_semantics = [#tpu.dimension_semantics<parallel>], iteration_bounds = array<i64: 1>, scalar_prefetch = 0 : i64, scratch_operands = 0 : i64, tpu.core_type = #tpu.core_type<tc>, window_params = [{transform_indices = @transform_0, window_bounds = array<i64: 2, 4, 8, 128>}, {transform_indices = @transform_1, window_bounds = array<i64: 2, 24, 128>}, {transform_indices = @transform_2, window_bounds = array<i64: 2, 24, 128>}]} {
    %c0 = arith.constant 0 : index
    %c0_0 = arith.constant 0 : index
    %c0_1 = arith.constant 0 : index
    %c0_2 = arith.constant 0 : index
    %0 = vector.load %arg1[%c0, %c0_0, %c0_1, %c0_2] : memref<2x4x8x128xbf16, #tpu.memory_space<vmem>>, vector<2x4x8x128xbf16>
    %c0_3 = arith.constant 0 : index
    %c0_4 = arith.constant 0 : index
    %c0_5 = arith.constant 0 : index
    %1 = vector.load %arg2[%c0_3, %c0_4, %c0_5] : memref<2x24x128xbf16, #tpu.memory_space<vmem>>, vector<2x24x128xbf16>
    %2 = arith.extf %0 : vector<2x4x8x128xbf16> to vector<2x4x8x128xf32>
    %cst = arith.constant dense<0.000000e+00> : vector<2x8x128xf32>
    %3 = vector.multi_reduction <add>, %2, %cst [1] : vector<2x4x8x128xf32> to vector<2x8x128xf32>
    %cst_6 = arith.constant 0.000000e+00 : f32
    %4 = vector.broadcast %cst_6 : f32 to vector<2x120x128xf32>
    %5 = tpu.concatenate %3, %4 in 1 : vector<2x8x128xf32>, vector<2x120x128xf32> -> vector<2x128x128xf32>
    %6 = arith.extf %1 : vector<2x24x128xbf16> to vector<2x24x128xf32>
    %7 = arith.mulf %6, %6 : vector<2x24x128xf32>
    %cst_7 = arith.constant dense<0.000000e+00> : vector<2x24xf32>
    %8 = vector.multi_reduction <add>, %7, %cst_7 [2] : vector<2x24x128xf32> to vector<2x24xf32>
    %9 = vector.shape_cast %8 : vector<2x24xf32> to vector<2x24x1xf32>
    %10 = arith.mulf %5, %5 : vector<2x128x128xf32>
    %cst_8 = arith.constant dense<0.000000e+00> : vector<2x128xf32>
    %11 = vector.multi_reduction <add>, %10, %cst_8 [2] : vector<2x128x128xf32> to vector<2x128xf32>
    %cst_9 = arith.constant 1.000000e-16 : f32
    %12 = vector.broadcast %cst_9 : f32 to vector<2x24x1xf32>
    %13 = arith.maximumf %9, %12 : vector<2x24x1xf32>
    %14 = math.rsqrt %13 : vector<2x24x1xf32>
    %cst_10 = arith.constant 1.600000e+01 : f32
    %15 = vector.broadcast %cst_10 : f32 to vector<2x24x1xf32>
    %16 = arith.mulf %14, %15 : vector<2x24x1xf32>
    %cst_11 = arith.constant 1.000000e-16 : f32
    %17 = vector.broadcast %cst_11 : f32 to vector<2x128xf32>
    %18 = arith.maximumf %11, %17 : vector<2x128xf32>
    %19 = math.rsqrt %18 : vector<2x128xf32>
    %20 = arith.truncf %5 : vector<2x128x128xf32> to vector<2x128x128xbf16>
    "tpu.trace_start"() <{level = 10 : i32, message = "bqd,bpd->bqp"}> : () -> ()
    %cst_12 = arith.constant dense<0.000000e+00> : vector<2x24x128xf32>
    %21 = tpu.matmul %1, %20, %cst_12 {dimension_numbers = #tpu.dot_dimension_numbers<[2], [2], [1], [1], [0, 0, 0, 1, 1, 1], [0], [0]>} : vector<2x24x128xbf16>, vector<2x128x128xbf16>, vector<2x24x128xf32> -> vector<2x24x128xf32>
    "tpu.trace_stop"() : () -> ()
    %22 = vector.broadcast %16 : vector<2x24x1xf32> to vector<2x24x128xf32>
    %23 = arith.mulf %21, %22 : vector<2x24x128xf32>
    %24 = vector.shape_cast %19 : vector<2x128xf32> to vector<2x1x128xf32>
    %25 = vector.broadcast %24 : vector<2x1x128xf32> to vector<2x24x128xf32>
    %26 = arith.mulf %23, %25 : vector<2x24x128xf32>
    %c0_13 = arith.constant 0 : index
    %c0_14 = arith.constant 0 : index
    %c0_15 = arith.constant 0 : index
    %27 = vector.load %arg3[%c0_13, %c0_14, %c0_15] : memref<2x24x128xf32, #tpu.memory_space<vmem>>, vector<2x24x128xf32>
    tpu.vector_store %arg3[%c0_13, %c0_14, %c0_15], %26 {strides = array<i32>} : memref<2x24x128xf32, #tpu.memory_space<vmem>>, vector<2x24x128xf32>,
    return
  }
  func.func @transform_0(%arg0: i32) -> (i32, i32, i32, i32) {
    %c0_i32 = arith.constant 0 : i32
    %c0_i32_0 = arith.constant 0 : i32
    %c0_i32_1 = arith.constant 0 : i32
    %c0_i32_2 = arith.constant 0 : i32
    return %arg0, %c0_i32, %c0_i32_0, %c0_i32_1 : i32, i32, i32, i32
  }
  func.func @transform_1(%arg0: i32) -> (i32, i32, i32) {
    %c0_i32 = arith.constant 0 : i32
    %c0_i32_0 = arith.constant 0 : i32
    %c0_i32_1 = arith.constant 0 : i32
    return %arg0, %c0_i32, %c0_i32_0 : i32, i32, i32
  }
  func.func @transform_2(%arg0: i32) -> (i32, i32, i32) {
    %c0_i32 = arith.constant 0 : i32
    %c0_i32_0 = arith.constant 0 : i32
    %c0_i32_1 = arith.constant 0 : i32
    return %arg0, %c0_i32, %c0_i32_0 : i32, i32, i32
  }
}

</mosaic_0001>

<llo_original>
// kernel: tpu_custom_call.1
$region0: #{tpu_custom_call.1}
  #allocation0 [shape = 'u32[]', space=smem, size = 0x4, offset = 0x4, fixed_abs, tag = 'smem constant byte address 0x4 - core index']
  #allocation1 [shape = 'u32[72,128]{1,0:T(1,128)}', space=vmem, size = 0x9000, scoped, tag = 'internal scratch']
  %s0 = inlined_call_operand.hbm [shape: bf16[2,4,8,128], index: 0, kind: input, shape index: {}]
  %s1 = inlined_call_operand.hbm [shape: bf16[2,24,128], index: 1, kind: input, shape index: {}]
  %s2 = inlined_call_operand.hbm [shape: f32[2,24,128], index: 2, kind: output, shape index: {}]
  %s3 = sld [smem:[#allocation0]]
  $region26: #{tpu_custom_call.1} parent=0
    _
  %s5 = ssub.s32 1, %s3
  %s6 = scalar_select 0, %s5, %s3
  $region1: #{tpu_custom_call.1} parent=0
    #allocation2 [shape = 'u8[16384]{0}', space=vmem, size = 0x4000, scoped, tag = 'input window, operand 0, single buffered']
    #allocation3 [shape = 's32[1]{0}', space=sflag, size = 0x4, scoped, tag = 'scoped memory for tpu_custom_call.1']
    #allocation4 [shape = 's32[1]{0}', space=sflag, size = 0x4, scoped, tag = 'scoped memory for tpu_custom_call.1']
    #allocation5 [shape = 'u8[12288]{0}', space=vmem, size = 0x3000, scoped, tag = 'input window, operand 1, single buffered']
    #allocation6 [shape = 's32[1]{0}', space=sflag, size = 0x4, scoped, tag = 'scoped memory for tpu_custom_call.1']
    #allocation7 [shape = 'u8[24576]{0}', space=vmem, size = 0x6000, scoped, tag = 'output window, operand 0, single buffered']
    %7 = vsyncpa [#allocation3], 0
    %8 = vsyncpa [#allocation6], 0
    %9 = vsyncpa [#allocation4], 0
    // Predicated region
    $region2: #{tpu_custom_call.1} parent=1 // pred_check
      _
    $region3: #{tpu_custom_call.1} parent=1 // pred_check_branch
      %11 = sbr.rel (0) target = $region5
    $region4: #{tpu_custom_call.1} parent=1 // pred_region
      %13 = vsyncadd [#allocation3], 0
      %s14 = sshll.u32 %s0, 4
      %s15 = int_to_ptr.hbm [resolvable:$true] %s14
      %s16 = sshll.u32 [#allocation2], 4
      %s17 = int_to_ptr.vmem [resolvable:$true] %s16
      %22 = dma.hbm_to_vmem [thread:$0]  %s15, 512, %s17, [#allocation3], 64, 64, 4
    $region5: #{tpu_custom_call.1} parent=1 // pred_fallthru
      _
    // Predicated region
    $region6: #{tpu_custom_call.1} parent=1 // pred_check
      _
    $region7: #{tpu_custom_call.1} parent=1 // pred_check_branch
      %24 = sbr.rel (0) target = $region9
    $region8: #{tpu_custom_call.1} parent=1 // pred_region
      %26 = vsyncadd [#allocation6], 0
      %s27 = sshll.u32 %s1, 4
      %s28 = int_to_ptr.hbm [resolvable:$true] %s27
      %s29 = sshll.u32 [#allocation5], 4
      %s30 = int_to_ptr.vmem [resolvable:$true] %s29
      %35 = dma.hbm_to_vmem [thread:$0]  %s28, 384, %s30, [#allocation6], 64, 64, 4
    $region9: #{tpu_custom_call.1} parent=1 // pred_fallthru
      _
    // Predicated region
    $region10: #{tpu_custom_call.1} parent=1 // pred_check
      _
    $region11: #{tpu_custom_call.1} parent=1 // pred_check_branch
      %37 = sbr.rel (0) target = $region13
    $region12: #{tpu_custom_call.1} parent=1 // pred_region
      %39 = dma.done [#allocation3], 512
    $region13: #{tpu_custom_call.1} parent=1 // pred_fallthru
      _
    // Predicated region
    $region14: #{tpu_custom_call.1} parent=1 // pred_check
      _
    $region15: #{tpu_custom_call.1} parent=1 // pred_check_branch
      %41 = sbr.rel (0) target = $region17
    $region16: #{tpu_custom_call.1} parent=1 // pred_region
      %43 = dma.done [#allocation6], 384
    $region17: #{tpu_custom_call.1} parent=1 // pred_fallthru
      _
    %v44 = vld [vmem:[#allocation2] sm:$0xf]
    %v45 = vld [vmem:[#allocation2 + $0x4] sm:$0xf]
    %v46 = vld [vmem:[#allocation2 + $0x8] sm:$0xf]
    %v47 = vld [vmem:[#allocation2 + $0xc] sm:$0xf]
    %v48 = vld [vmem:[#allocation2 + $0x10] sm:$0xf]
    %v49 = vld [vmem:[#allocation2 + $0x14] sm:$0xf]
    %v50 = vld [vmem:[#allocation2 + $0x18] sm:$0xf]
    %v51 = vld [vmem:[#allocation2 + $0x1c] sm:$0xf]
    %v52 = vld [vmem:[#allocation5] sm:$0xf]
    %v53 = vld [vmem:[#allocation5 + $0x4] sm:$0xf]
    %v54 = vld [vmem:[#allocation5 + $0x8] sm:$0xf]
    %v55 = vld [vmem:[#allocation5 + $0xc] sm:$0xf]
    %v56 = vld [vmem:[#allocation5 + $0x10] sm:$0xf]
    %v57 = vld [vmem:[#allocation5 + $0x14] sm:$0xf]
    %v58 = vunpack.c.l.bf16 %v44
    %v59 = vunpack.c.l.bf16 %v45
    %v60 = vunpack.c.l.bf16 %v46
    %v61 = vunpack.c.l.bf16 %v47
    %v62 = vunpack.c.l.bf16 %v48
    %v63 = vunpack.c.l.bf16 %v49
    %v64 = vunpack.c.l.bf16 %v50
    %v65 = vunpack.c.l.bf16 %v51
    %v66 = vadd.f32 %v58, %v59
    %v67 = vadd.f32 %v66, %v60
    %v68 = vadd.f32 %v67, %v61
    %v69 = vadd.f32 %v62, %v63
    %v70 = vadd.f32 %v69, %v64
    %v71 = vadd.f32 %v70, %v65
    %v72 = vunpack.c.l.bf16 %v52
    %v73 = vunpack.c.l.bf16 %v53
    %v74 = vunpack.c.l.bf16 %v54
    %v75 = vunpack.c.l.bf16 %v55
    %v76 = vunpack.c.l.bf16 %v56
    %v77 = vunpack.c.l.bf16 %v57
    %v78 = vmul.f32 %v72, %v72
    %v79 = vmul.f32 %v73, %v73
    %v80 = vmul.f32 %v74, %v74
    %v81 = vmul.f32 %v75, %v75
    %v82 = vmul.f32 %v76, %v76
    %v83 = vmul.f32 %v77, %v77
    %84 = vadd.xlane.f32.xlu0 %v78
    %v85 = vpop.xlane.xlu0 %84
    %86 = vadd.xlane.f32.xlu0 %v79
    %v87 = vpop.xlane.xlu0 %86
    %88 = vadd.xlane.f32.xlu0 %v80
    %v89 = vpop.xlane.xlu0 %88
    %90 = vadd.xlane.f32.xlu0 %v81
    %v91 = vpop.xlane.xlu0 %90
    %92 = vadd.xlane.f32.xlu0 %v82
    %v93 = vpop.xlane.xlu0 %92
    %94 = vadd.xlane.f32.xlu0 %v83
    %v95 = vpop.xlane.xlu0 %94
    %v96 = vmul.f32 %v68, %v68
    %v97 = vmul.f32 %v71, %v71
    %98 = vadd.xlane.f32.xlu0 %v96
    %v99 = vpop.xlane.xlu0 %98
    %100 = vadd.xlane.f32.xlu0 0.0
    %v101 = vpop.xlane.xlu0 %100
    %102 = vadd.xlane.f32.xlu0 %v97
    %v103 = vpop.xlane.xlu0 %102
    %v104 = vmax.f32 %v85, 1e-16
    %v105 = vmax.f32 %v87, 1e-16
    %v106 = vmax.f32 %v89, 1e-16
    %v107 = vmax.f32 %v91, 1e-16
    %v108 = vmax.f32 %v93, 1e-16
    %v109 = vmax.f32 %v95, 1e-16
    %v110 = vrsqrt.pop %v104
    %v111 = vmul.f32 %v110, %v104
    %v112 = vmul.f32 %v111, %v110
    %v113 = vmul.f32 0.5, %v112
    %v114 = vsub.f32 1.5, %v113
    %v115 = vmul.f32 %v110, %v114
    %vm116 = vweird.f32 %v104
    %vm117 = vweird.f32 %v110
    %vm118 = vmor %vm116, %vm117
    %v119 = vsel %vm118, %v110, %v115
    %v120 = vrsqrt.pop %v105
    %v121 = vmul.f32 %v120, %v105
    %v122 = vmul.f32 %v121, %v120
    %v123 = vmul.f32 0.5, %v122
    %v124 = vsub.f32 1.5, %v123
    %v125 = vmul.f32 %v120, %v124
    %vm126 = vweird.f32 %v105
    %vm127 = vweird.f32 %v120
    %vm128 = vmor %vm126, %vm127
    %v129 = vsel %vm128, %v120, %v125
    %v130 = vrsqrt.pop %v106
    %v131 = vmul.f32 %v130, %v106
    %v132 = vmul.f32 %v131, %v130
    %v133 = vmul.f32 0.5, %v132
    %v134 = vsub.f32 1.5, %v133
    %v135 = vmul.f32 %v130, %v134
    %vm136 = vweird.f32 %v106
    %vm137 = vweird.f32 %v130
    %vm138 = vmor %vm136, %vm137
    %v139 = vsel %vm138, %v130, %v135
    %v140 = vrsqrt.pop %v107
    %v141 = vmul.f32 %v140, %v107
    %v142 = vmul.f32 %v141, %v140
    %v143 = vmul.f32 0.5, %v142
    %v144 = vsub.f32 1.5, %v143
    %v145 = vmul.f32 %v140, %v144
    %vm146 = vweird.f32 %v107
    %vm147 = vweird.f32 %v140
    %vm148 = vmor %vm146, %vm147
    %v149 = vsel %vm148, %v140, %v145
    %v150 = vrsqrt.pop %v108
    %v151 = vmul.f32 %v150, %v108
    %v152 = vmul.f32 %v151, %v150
    %v153 = vmul.f32 0.5, %v152
    %v154 = vsub.f32 1.5, %v153
    %v155 = vmul.f32 %v150, %v154
    %vm156 = vweird.f32 %v108
    %vm157 = vweird.f32 %v150
    %vm158 = vmor %vm156, %vm157
    %v159 = vsel %vm158, %v150, %v155
    %v160 = vrsqrt.pop %v109
    %v161 = vmul.f32 %v160, %v109
    %v162 = vmul.f32 %v161, %v160
    %v163 = vmul.f32 0.5, %v162
    %v164 = vsub.f32 1.5, %v163
    %v165 = vmul.f32 %v160, %v164
    %vm166 = vweird.f32 %v109
    %vm167 = vweird.f32 %v160
    %vm168 = vmor %vm166, %vm167
    %v169 = vsel %vm168, %v160, %v165
    %v170 = vmul.f32 %v119, 16.0
    %v171 = vmul.f32 %v129, 16.0
    %v172 = vmul.f32 %v139, 16.0
    %v173 = vmul.f32 %v149, 16.0
    %v174 = vmul.f32 %v159, 16.0
    %v175 = vmul.f32 %v169, 16.0
    %v176 = vmax.f32 %v99, 1e-16
    %v177 = vmax.f32 %v101, 1e-16
    %v178 = vmax.f32 %v103, 1e-16
    %v179 = vrsqrt.pop %v176
    %v180 = vmul.f32 %v179, %v176
    %v181 = vmul.f32 %v180, %v179
    %v182 = vmul.f32 0.5, %v181
    %v183 = vsub.f32 1.5, %v182
    %v184 = vmul.f32 %v179, %v183
    %vm185 = vweird.f32 %v176
    %vm186 = vweird.f32 %v179
    %vm187 = vmor %vm185, %vm186
    %v188 = vsel %vm187, %v179, %v184
    %v189 = vrsqrt.pop %v177
    %v190 = vmul.f32 %v189, %v177
    %v191 = vmul.f32 %v190, %v189
    %v192 = vmul.f32 0.5, %v191
    %v193 = vsub.f32 1.5, %v192
    %v194 = vmul.f32 %v189, %v193
    %vm195 = vweird.f32 %v177
    %vm196 = vweird.f32 %v189
    %vm197 = vmor %vm195, %vm196
    %v198 = vsel %vm197, %v189, %v194
    %v199 = vrsqrt.pop %v178
    %v200 = vmul.f32 %v199, %v178
    %v201 = vmul.f32 %v200, %v199
    %v202 = vmul.f32 0.5, %v201
    %v203 = vsub.f32 1.5, %v202
    %v204 = vmul.f32 %v199, %v203
    %vm205 = vweird.f32 %v178
    %vm206 = vweird.f32 %v199
    %vm207 = vmor %vm205, %vm206
    %v208 = vsel %vm207, %v199, %v204
    %v209 = vpack.c.bf16 %v68, %v68
    %v210 = vpack.c.bf16 0.0, 0.0
    %v211 = vpack.c.bf16 %v71, %v71
    %v215 = vunpack.c.l.b16 %v52
    %v216 = vunpack.c.l.b16 %v53
    %v217 = vunpack.c.l.b16 %v54
    %v218 = vpack.c.b16 %v216, %v215
    %v219 = vpack.c.b16 %v217, %v217
    %v224 = vunpack.c.l.b16 %v209
    %v225 = vunpack.c.l.b16 %v210
    %v226 = vpack.c.b16 %v225, %v224
    %v227 = vpack.c.b16 %v225, %v225
    %230 = vmatpush.bf16.xpose.msra.mxu0 %v227
    %231 = vmatpush.bf16.xpose.msra.mxu0 %v227
    %232 = vmatpush.bf16.xpose.msra.mxu0 %v227
    %233 = vmatpush.bf16.xpose.msra.mxu0 %v227
    %234 = vmatpush.bf16.xpose.msra.mxu0 %v227
    %235 = vmatpush.bf16.xpose.msra.mxu0 %v227
    %236 = vmatpush.bf16.xpose.msra.mxu0 %v227
    %237 = vmatpush.bf16.xpose.msra.mxu0 %v226
    %238 = vmatmul.bf16.gmra.mxu0 %v218
    %v239 = vpop.f32.mrf.mxu0
    %v240 = vadd.f32 0.0, %v239
    %v241 = vpop.f32.mrf.mxu0
    %v242 = vadd.f32 0.0, %v241
    %243 = vmatmul.bf16.gmra.mxu0 %v219
    %v244 = vpop.f32.mrf.mxu0
    %v245 = vadd.f32 0.0, %v244
    %v246 = vpop.f32.mrf.mxu0
    %247 = vdwg.mxu0
    %v251 = vunpack.c.l.b16 %v55
    %v252 = vunpack.c.l.b16 %v56
    %v253 = vunpack.c.l.b16 %v57
    %v254 = vpack.c.b16 %v252, %v251
    %v255 = vpack.c.b16 %v253, %v253
    %v259 = vunpack.c.l.b16 %v211
    %v260 = vpack.c.b16 %v225, %v259
    %262 = vmatpush.bf16.xpose.msra.mxu0 %v227
    %263 = vmatpush.bf16.xpose.msra.mxu0 %v227
    %264 = vmatpush.bf16.xpose.msra.mxu0 %v227
    %265 = vmatpush.bf16.xpose.msra.mxu0 %v227
    %266 = vmatpush.bf16.xpose.msra.mxu0 %v227
    %267 = vmatpush.bf16.xpose.msra.mxu0 %v227
    %268 = vmatpush.bf16.xpose.msra.mxu0 %v227
    %269 = vmatpush.bf16.xpose.msra.mxu0 %v260
    %270 = vmatmul.bf16.gmra.mxu0 %v254
    %v271 = vpop.f32.mrf.mxu0
    %v272 = vadd.f32 0.0, %v271
    %v273 = vpop.f32.mrf.mxu0
    %v274 = vadd.f32 0.0, %v273
    %275 = vmatmul.bf16.gmra.mxu0 %v255
    %v276 = vpop.f32.mrf.mxu0
    %v277 = vadd.f32 0.0, %v276
    %v278 = vpop.f32.mrf.mxu0
    %279 = vdwg.mxu0
    %v280 = vmul.f32 %v240, %v170
    %v281 = vmul.f32 %v242, %v171
    %v282 = vmul.f32 %v245, %v172
    %v283 = vmul.f32 %v272, %v173
    %v284 = vmul.f32 %v274, %v174
    %v285 = vmul.f32 %v277, %v175
    %v289 = vlaneseq
    %v290 = vand.u32 %v289, 127
    %v291 = vperm.slane %v188, %v290
    %v292 = vadd.s32 %v290, 4294967288
    %v293 = vperm.slane %v198, %v292
    %vm294 = vcmask 130112
    %v295 = vsel %vm294, %v293, %v291
    %v296 = vadd.s32 %v290, 4294967280
    %v297 = vperm.slane %v198, %v296
    %vm298 = vcmask 195712
    %v299 = vsel %vm298, %v297, %v295
    %v300 = vadd.s32 %v290, 4294967272
    %v301 = vperm.slane %v198, %v300
    %vm302 = vcmask 261312
    %v303 = vsel %vm302, %v301, %v299
    %v304 = vadd.s32 %v290, 4294967264
    %v305 = vperm.slane %v198, %v304
    %vm306 = vcmask 326912
    %v307 = vsel %vm306, %v305, %v303
    %v308 = vadd.s32 %v290, 4294967256
    %v309 = vperm.slane %v198, %v308
    %vm310 = vcmask 392512
    %v311 = vsel %vm310, %v309, %v307
    %v312 = vadd.s32 %v290, 4294967248
    %v313 = vperm.slane %v198, %v312
    %vm314 = vcmask 458112
    %v315 = vsel %vm314, %v313, %v311
    %v316 = vadd.s32 %v290, 4294967240
    %v317 = vperm.slane %v198, %v316
    %vm318 = vcmask 523712
    %v319 = vsel %vm318, %v317, %v315
    %v320 = vadd.s32 %v290, 4294967232
    %v321 = vperm.slane %v198, %v320
    %vm322 = vcmask 589312
    %v323 = vsel %vm322, %v321, %v319
    %v324 = vadd.s32 %v290, 4294967224
    %v325 = vperm.slane %v198, %v324
    %vm326 = vcmask 654912
    %v327 = vsel %vm326, %v325, %v323
    %v328 = vadd.s32 %v290, 4294967216
    %v329 = vperm.slane %v198, %v328
    %vm330 = vcmask 720512
    %v331 = vsel %vm330, %v329, %v327
    %v332 = vadd.s32 %v290, 4294967208
    %v333 = vperm.slane %v198, %v332
    %vm334 = vcmask 786112
    %v335 = vsel %vm334, %v333, %v331
    %v336 = vadd.s32 %v290, 4294967200
    %v337 = vperm.slane %v198, %v336
    %vm338 = vcmask 851712
    %v339 = vsel %vm338, %v337, %v335
    %v340 = vadd.s32 %v290, 4294967192
    %v341 = vperm.slane %v198, %v340
    %vm342 = vcmask 917312
    %v343 = vsel %vm342, %v341, %v339
    %v344 = vadd.s32 %v290, 4294967184
    %v345 = vperm.slane %v198, %v344
    %vm346 = vcmask 982912
    %v347 = vsel %vm346, %v345, %v343
    %v348 = vadd.s32 %v290, 4294967176
    %v349 = vperm.slane %v198, %v348
    %vm350 = vcmask 1048512
    %v351 = vsel %vm350, %v349, %v347
    %v352 = vperm.slane %v208, %v290
    %v353 = vsel %vm294, %v293, %v352
    %v354 = vsel %vm298, %v297, %v353
    %v355 = vsel %vm302, %v301, %v354
    %v356 = vsel %vm306, %v305, %v355
    %v357 = vsel %vm310, %v309, %v356
    %v358 = vsel %vm314, %v313, %v357
    %v359 = vsel %vm318, %v317, %v358
    %v360 = vsel %vm322, %v321, %v359
    %v361 = vsel %vm326, %v325, %v360
    %v362 = vsel %vm330, %v329, %v361
    %v363 = vsel %vm334, %v333, %v362
    %v364 = vsel %vm338, %v337, %v363
    %v365 = vsel %vm342, %v341, %v364
    %v366 = vsel %vm346, %v345, %v365
    %v367 = vsel %vm350, %v349, %v366
    %vm368 = vcmask 1042434
    %v369 = vsel %vm368, %v351, %v351
    %vm370 = vcmask 1043459
    %v371 = vsel %vm370, %v351, %v369
    %vm372 = vcmask 1044484
    %v373 = vsel %vm372, %v351, %v371
    %vm374 = vcmask 1045509
    %v375 = vsel %vm374, %v351, %v373
    %vm376 = vcmask 1046534
    %v377 = vsel %vm376, %v351, %v375
    %vm378 = vcmask 1047559
    %v379 = vsel %vm378, %v351, %v377
    %v380 = vsel %vm368, %v367, %v367
    %v381 = vsel %vm370, %v367, %v380
    %v382 = vsel %vm372, %v367, %v381
    %v383 = vsel %vm374, %v367, %v382
    %v384 = vsel %vm376, %v367, %v383
    %v385 = vsel %vm378, %v367, %v384
    %v388 = vmul.f32 %v280, %v379
    %v389 = vmul.f32 %v281, %v379
    %v390 = vmul.f32 %v282, %v379
    %v391 = vmul.f32 %v283, %v385
    %v392 = vmul.f32 %v284, %v385
    %v393 = vmul.f32 %v285, %v385
    %394 = vst [vmem:[#allocation7] sm:$0xff] %v388
    %395 = vst [vmem:[#allocation7 + $0x8] sm:$0xff] %v389
    %396 = vst [vmem:[#allocation7 + $0x10] sm:$0xff] %v390
    %397 = vst [vmem:[#allocation7 + $0x18] sm:$0xff] %v391
    %398 = vst [vmem:[#allocation7 + $0x20] sm:$0xff] %v392
    %399 = vst [vmem:[#allocation7 + $0x28] sm:$0xff] %v393
    // Predicated region
    $region18: #{tpu_custom_call.1} parent=1 // pred_check
      _
    $region19: #{tpu_custom_call.1} parent=1 // pred_check_branch
      %401 = sbr.rel (0) target = $region21
    $region20: #{tpu_custom_call.1} parent=1 // pred_region
      %403 = vsyncadd [#allocation4], 0
      %s404 = sshll.u32 [#allocation7], 4
      %s405 = int_to_ptr.vmem [resolvable:$true] %s404
      %s406 = sshll.u32 %s2, 4
      %s407 = int_to_ptr.hbm [resolvable:$true] %s406
      %412 = dma.vmem_to_hbm [thread:$0]  %s405, 768, %s407, [#allocation4], 128, 128, 8
    $region21: #{tpu_custom_call.1} parent=1 // pred_fallthru
      _
    // Predicated region
    $region22: #{tpu_custom_call.1} parent=1 // pred_check
      _
    $region23: #{tpu_custom_call.1} parent=1 // pred_check_branch
      %414 = sbr.rel (0) target = $region25
    $region24: #{tpu_custom_call.1} parent=1 // pred_region
      %416 = dma.done [#allocation4], 768
    $region25: #{tpu_custom_call.1} parent=1 // pred_fallthru
      _
    %417 = vsyncpa [#allocation3], 1
    %418 = vsyncpa [#allocation6], 1
    %419 = vsyncpa [#allocation4], 1

</llo_original>
